<compile_context>
chip_gen: v7x
topology: tpu7x:2x2x1
jax: 0.10.0
libtpu: 0.0.40
codegen_flags: <defaults>
</compile_context>

<pallas_src>
import functools

import jax
import jax.numpy as jnp
from jax.experimental import pallas as pl
from jax.experimental.pallas import tpu as pltpu

_LANES = 128


def _fold_rows(x, r_acc):
    """(1, r_tile, 128) -> (1, r_acc, 128) by summing groups of sublane rows."""
    r_tile = x.shape[1]
    if r_tile == r_acc:
        return x
    return x.reshape(1, r_tile // r_acc, r_acc, _LANES).sum(axis=1)


def _instance_loss_kernel(seg_ref, gt_ref, bbox_ref, gtbbox_ref,
                          bce_acc_ref, l1_acc_ref, *, scale, hard_labels):
    """One (batch, row-tile) grid step.

    seg_ref / gt_ref        : (1, Cs, r_tile, 128)
    bbox_ref / gtbbox_ref   : (1, Cb, r_tile, 128)
    bce_acc_ref, l1_acc_ref : (1, r_acc, 128) f32 outputs, resident across the
                              row-tile (reduction) axis.
    """
    t = pl.program_id(1)

    @pl.when(t == 0)
    def _init():
        bce_acc_ref[...] = jnp.zeros_like(bce_acc_ref)
        l1_acc_ref[...] = jnp.zeros_like(l1_acc_ref)

    r_acc = bce_acc_ref.shape[1]
    need_gt = (scale[0] > 0) or (scale[1] > 0)
    gt = gt_ref[...].astype(jnp.float32) if need_gt else None

    if scale[0] > 0:
        p = seg_ref[...].astype(jnp.float32)
        if hard_labels:
            # Hard {0,1} targets: single log per element.
            x = jnp.where(gt > 0.5, p, 1.0 - p)
            bce = -jnp.maximum(jnp.log(x), -100.0)
        else:
            # General (soft-label) BCE; PyTorch clamps log terms at -100.
            log_p = jnp.maximum(jnp.log(p), -100.0)
            log_1mp = jnp.maximum(jnp.log(1.0 - p), -100.0)
            bce = -(gt * log_p + (1.0 - gt) * log_1mp)
        bce_acc_ref[...] += _fold_rows(jnp.sum(bce, axis=1), r_acc)

    if scale[1] > 0:
        bb = bbox_ref[...].astype(jnp.float32)
        gb = gtbbox_ref[...].astype(jnp.float32)
        # Reduce over the bbox channel axis first, then apply the mask once.
        l1 = jnp.sum(jnp.abs(bb - gb), axis=1)       # (1, r_tile, 128)
        gt_seg = gt[:, 0]                            # channel-0 seg mask
        l1_acc_ref[...] += _fold_rows(l1 * gt_seg, r_acc)


def _choose_row_tile(r_total, per_row_bytes, budget_bytes=12 << 20):
    """Largest row tile that (a) is a multiple of 8, (b) divides r_total evenly,
    and (c) keeps the double-buffered input footprint within budget_bytes.
    Falls back to the full extent for tiny inputs."""
    cap = (budget_bytes // (2 * per_row_bytes)) // 8 * 8
    if cap <= 0:
        cap = 8
    if r_total <= cap:
        return r_total
    best = None
    d = 8
    while d <= cap:
        if r_total % d == 0:
            best = d
        d += 8
    return best if best is not None else r_total


def instance_loss(prediction, gt_segbnd, *, bbox, scale=(1.0, 1.0), n_cls=0,
                  hard_labels=True):
    """Pallas equivalent of InstanceLoss.forward (n_cls <= 1 path).

    prediction: (segbnd, pred_bbox) with segbnd probabilities in (0, 1).
    Returns (loss, segbndloss, bboxloss) as float32 scalars.
    Set hard_labels=False for soft gt_segbnd targets (exact two-log BCE).
    """
    # TODO(synk): n_cls > 1 KL-divergence branch (prediction[2].log() vs
    # gt_segbnd[:, 2:]) is not implemented; the default constructor uses n_cls=0.
    assert n_cls <= 1 and len(scale) == 2

    segbnd, pred_bbox = prediction
    B, Cs, H, W = segbnd.shape
    Cb = pred_bbox.shape[1]
    HW = H * W
    assert HW % _LANES == 0, "H*W must be a multiple of 128"
    r_total = HW // _LANES

    scale = tuple(float(s) for s in scale)

    # Metadata-only reshapes; native dtypes are preserved (kernel upcasts).
    seg4 = segbnd.reshape(B, Cs, r_total, _LANES)
    gt4 = gt_segbnd.reshape(B, Cs, r_total, _LANES)
    bbox4 = pred_bbox.reshape(B, Cb, r_total, _LANES)
    gtbbox4 = bbox.reshape(B, Cb, r_total, _LANES)

    per_row_bytes = _LANES * (
        Cs * seg4.dtype.itemsize + Cs * gt4.dtype.itemsize
        + Cb * bbox4.dtype.itemsize + Cb * gtbbox4.dtype.itemsize)
    r_tile = _choose_row_tile(r_total, per_row_bytes)
    n_tiles = r_total // r_tile
    r_acc = 8 if r_tile % 8 == 0 else r_tile   # tiny-input fallback (< 8 rows)

    kernel = functools.partial(
        _instance_loss_kernel, scale=scale, hard_labels=hard_labels)

    acc_shape = jax.ShapeDtypeStruct((B, r_acc, _LANES), jnp.float32)
    acc_spec = pl.BlockSpec((1, r_acc, _LANES), lambda b, t: (b, 0, 0))

    bce_acc, l1_acc = pl.pallas_call(
        kernel,
        out_shape=(acc_shape, acc_shape),
        grid_spec=pltpu.PrefetchScalarGridSpec(
            num_scalar_prefetch=0,
            grid=(B, n_tiles),
            in_specs=[
                pl.BlockSpec((1, Cs, r_tile, _LANES), lambda b, t: (b, 0, t, 0)),
                pl.BlockSpec((1, Cs, r_tile, _LANES), lambda b, t: (b, 0, t, 0)),
                pl.BlockSpec((1, Cb, r_tile, _LANES), lambda b, t: (b, 0, t, 0)),
                pl.BlockSpec((1, Cb, r_tile, _LANES), lambda b, t: (b, 0, t, 0)),
            ],
            out_specs=[acc_spec, acc_spec],
        ),
        compiler_params=pltpu.CompilerParams(
            dimension_semantics=("parallel", "arbitrary"),
            vmem_limit_bytes=32 * 1024 * 1024),
    )(seg4, gt4, bbox4, gtbbox4)

    if scale[0] > 0:
        segbndloss = jnp.sum(bce_acc) / float(B * Cs * HW)
    else:
        segbndloss = jnp.float32(0.0)
    if scale[1] > 0:
        bboxloss = jnp.sum(l1_acc) / float(B * Cb * HW)
    else:
        bboxloss = jnp.float32(0.0)
    loss = scale[0] * segbndloss + scale[1] * bboxloss
    return loss, segbndloss, bboxloss


if __name__ == "__main__":
    key = jax.random.PRNGKey(0)
    k1, k2, k3, k4 = jax.random.split(key, 4)

    B, H, W = 2, 16, 16
    # prediction[0]: segbnd probabilities in (0,1); prediction[1]: bbox maps.
    segbnd = jax.nn.sigmoid(jax.random.normal(k1, (B, 2, H, W), jnp.float32))
    gt_segbnd = (jax.random.uniform(k2, (B, 2, H, W)) > 0.5).astype(jnp.float32)
    pred_bbox = jax.random.normal(k3, (B, 4, H, W), jnp.float32)
    gt_bbox = jax.random.normal(k4, (B, 4, H, W), jnp.float32)

    loss, segbndloss, bboxloss = instance_loss(
        (segbnd, pred_bbox), gt_segbnd, bbox=gt_bbox, scale=(1.0, 1.0), n_cls=0)
    jax.block_until_ready(loss)

    # Pure-JAX reference (matches the PyTorch forward semantics).
    gt_seg = gt_segbnd[:, 0]
    ref_bbox = jnp.mean(jnp.abs(pred_bbox - gt_bbox) * gt_seg[:, None])
    ref_bce = jnp.mean(-(gt_segbnd * jnp.log(segbnd)
                         + (1.0 - gt_segbnd) * jnp.log(1.0 - segbnd)))
    ref_loss = 1.0 * ref_bce + 1.0 * ref_bbox

    assert jnp.allclose(segbndloss, ref_bce, rtol=1e-5, atol=1e-5)
    assert jnp.allclose(bboxloss, ref_bbox, rtol=1e-5, atol=1e-5)
    assert jnp.allclose(loss, ref_loss, rtol=1e-5, atol=1e-5)

    # Also exercise the soft-label (exact two-log BCE) path.
    loss2, seg2, box2 = instance_loss(
        (segbnd, pred_bbox), gt_segbnd, bbox=gt_bbox, scale=(1.0, 1.0),
        n_cls=0, hard_labels=False)
    jax.block_until_ready(loss2)
    assert jnp.allclose(seg2, ref_bce, rtol=1e-5, atol=1e-5)
    assert jnp.allclose(loss2, ref_loss, rtol=1e-5, atol=1e-5)

    print("KERNEL_OK")
</pallas_src>

<mosaic_0001>
module attributes {stable_mosaic.version = 11 : i64} {
  func.func @_instance_loss_kernel(%arg0: i32, %arg1: i32, %arg2: memref<1x2x2x128xf32, #tpu.memory_space<vmem>>, %arg3: memref<1x2x2x128xf32, #tpu.memory_space<vmem>>, %arg4: memref<1x4x2x128xf32, #tpu.memory_space<vmem>>, %arg5: memref<1x4x2x128xf32, #tpu.memory_space<vmem>>, %arg6: memref<1x2x128xf32, #tpu.memory_space<vmem>>, %arg7: memref<1x2x128xf32, #tpu.memory_space<vmem>>) attributes {dimension_semantics = [#tpu.dimension_semantics<parallel>, #tpu.dimension_semantics<arbitrary>], iteration_bounds = array<i64: 2, 1>, scalar_prefetch = 0 : i64, scratch_operands = 0 : i64, tpu.core_type = #tpu.core_type<tc>, window_params = [{transform_indices = @transform_0, window_bounds = array<i64: 1, 2, 2, 128>}, {transform_indices = @transform_1, window_bounds = array<i64: 1, 2, 2, 128>}, {transform_indices = @transform_2, window_bounds = array<i64: 1, 4, 2, 128>}, {transform_indices = @transform_3, window_bounds = array<i64: 1, 4, 2, 128>}, {transform_indices = @transform_4, window_bounds = array<i64: 1, 2, 128>}, {transform_indices = @transform_5, window_bounds = array<i64: 1, 2, 128>}]} {
    %c0_i32 = arith.constant 0 : i32
    %0 = arith.cmpi eq, %arg1, %c0_i32 : i32
    %1 = arith.extui %0 : i1 to i32
    %c0_i32_0 = arith.constant 0 : i32
    %2 = arith.cmpi ne, %1, %c0_i32_0 : i32
    scf.if %2 {
      %cst_33 = arith.constant 0.000000e+00 : f32
      %30 = vector.broadcast %cst_33 : f32 to vector<1x2x128xf32>
      %c0_34 = arith.constant 0 : index
      %c0_35 = arith.constant 0 : index
      %c0_36 = arith.constant 0 : index
      %31 = vector.load %arg6[%c0_34, %c0_35, %c0_36] : memref<1x2x128xf32, #tpu.memory_space<vmem>>, vector<1x2x128xf32>
      tpu.vector_store %arg6[%c0_34, %c0_35, %c0_36], %30 {strides = array<i32>} : memref<1x2x128xf32, #tpu.memory_space<vmem>>, vector<1x2x128xf32>,
      %cst_37 = arith.constant 0.000000e+00 : f32
      %32 = vector.broadcast %cst_37 : f32 to vector<1x2x128xf32>
      %c0_38 = arith.constant 0 : index
      %c0_39 = arith.constant 0 : index
      %c0_40 = arith.constant 0 : index
      %33 = vector.load %arg7[%c0_38, %c0_39, %c0_40] : memref<1x2x128xf32, #tpu.memory_space<vmem>>, vector<1x2x128xf32>
      tpu.vector_store %arg7[%c0_38, %c0_39, %c0_40], %32 {strides = array<i32>} : memref<1x2x128xf32, #tpu.memory_space<vmem>>, vector<1x2x128xf32>,
    } else {
    }
    %c0 = arith.constant 0 : index
    %c0_1 = arith.constant 0 : index
    %c0_2 = arith.constant 0 : index
    %c0_3 = arith.constant 0 : index
    %3 = vector.load %arg3[%c0, %c0_1, %c0_2, %c0_3] : memref<1x2x2x128xf32, #tpu.memory_space<vmem>>, vector<1x2x2x128xf32>
    %c0_4 = arith.constant 0 : index
    %c0_5 = arith.constant 0 : index
    %c0_6 = arith.constant 0 : index
    %c0_7 = arith.constant 0 : index
    %4 = vector.load %arg2[%c0_4, %c0_5, %c0_6, %c0_7] : memref<1x2x2x128xf32, #tpu.memory_space<vmem>>, vector<1x2x2x128xf32>
    %cst = arith.constant 5.000000e-01 : f32
    %5 = vector.broadcast %cst : f32 to vector<1x2x2x128xf32>
    %6 = arith.cmpf ogt, %3, %5 : vector<1x2x2x128xf32>
    %cst_8 = arith.constant 1.000000e+00 : f32
    %7 = vector.broadcast %cst_8 : f32 to vector<1x2x2x128xf32>
    %8 = arith.subf %7, %4 : vector<1x2x2x128xf32>
    %9 = arith.select %6, %4, %8 : vector<1x2x2x128xi1>, vector<1x2x2x128xf32>
    %10 = math.log %9 : vector<1x2x2x128xf32>
    %cst_9 = arith.constant -1.000000e+02 : f32
    %11 = vector.broadcast %cst_9 : f32 to vector<1x2x2x128xf32>
    %12 = arith.maximumf %10, %11 : vector<1x2x2x128xf32>
    %cst_10 = arith.constant 0.000000e+00 : f32
    %13 = vector.broadcast %cst_10 : f32 to vector<1x2x2x128xf32>
    %14 = arith.subf %13, %12 : vector<1x2x2x128xf32>
    %c0_11 = arith.constant 0 : index
    %c0_12 = arith.constant 0 : index
    %c0_13 = arith.constant 0 : index
    %15 = vector.load %arg6[%c0_11, %c0_12, %c0_13] : memref<1x2x128xf32, #tpu.memory_space<vmem>>, vector<1x2x128xf32>
    %cst_14 = arith.constant dense<0.000000e+00> : vector<1x2x128xf32>
    %16 = vector.multi_reduction <add>, %14, %cst_14 [1] : vector<1x2x2x128xf32> to vector<1x2x128xf32>
    %17 = arith.addf %15, %16 : vector<1x2x128xf32>
    %c0_15 = arith.constant 0 : index
    %c0_16 = arith.constant 0 : index
    %c0_17 = arith.constant 0 : index
    %18 = vector.load %arg6[%c0_15, %c0_16, %c0_17] : memref<1x2x128xf32, #tpu.memory_space<vmem>>, vector<1x2x128xf32>
    tpu.vector_store %arg6[%c0_15, %c0_16, %c0_17], %17 {strides = array<i32>} : memref<1x2x128xf32, #tpu.memory_space<vmem>>, vector<1x2x128xf32>,
    %c0_18 = arith.constant 0 : index
    %c0_19 = arith.constant 0 : index
    %c0_20 = arith.constant 0 : index
    %c0_21 = arith.constant 0 : index
    %19 = vector.load %arg4[%c0_18, %c0_19, %c0_20, %c0_21] : memref<1x4x2x128xf32, #tpu.memory_space<vmem>>, vector<1x4x2x128xf32>
    %c0_22 = arith.constant 0 : index
    %c0_23 = arith.constant 0 : index
    %c0_24 = arith.constant 0 : index
    %c0_25 = arith.constant 0 : index
    %20 = vector.load %arg5[%c0_22, %c0_23, %c0_24, %c0_25] : memref<1x4x2x128xf32, #tpu.memory_space<vmem>>, vector<1x4x2x128xf32>
    %21 = arith.subf %19, %20 : vector<1x4x2x128xf32>
    %22 = math.absf %21 : vector<1x4x2x128xf32>
    %cst_26 = arith.constant dense<0.000000e+00> : vector<1x2x128xf32>
    %23 = vector.multi_reduction <add>, %22, %cst_26 [1] : vector<1x4x2x128xf32> to vector<1x2x128xf32>
    %24 = vector.extract_strided_slice %3 {offsets = [0, 0, 0, 0], sizes = [1, 1, 2, 128], strides = [1, 1, 1, 1]} : vector<1x2x2x128xf32> to vector<1x1x2x128xf32>
    %25 = vector.shape_cast %24 : vector<1x1x2x128xf32> to vector<1x2x128xf32>
    %c0_27 = arith.constant 0 : index
    %c0_28 = arith.constant 0 : index
    %c0_29 = arith.constant 0 : index
    %26 = vector.load %arg7[%c0_27, %c0_28, %c0_29] : memref<1x2x128xf32, #tpu.memory_space<vmem>>, vector<1x2x128xf32>
    %27 = arith.mulf %23, %25 : vector<1x2x128xf32>
    %28 = arith.addf %26, %27 : vector<1x2x128xf32>
    %c0_30 = arith.constant 0 : index
    %c0_31 = arith.constant 0 : index
    %c0_32 = arith.constant 0 : index
    %29 = vector.load %arg7[%c0_30, %c0_31, %c0_32] : memref<1x2x128xf32, #tpu.memory_space<vmem>>, vector<1x2x128xf32>
    tpu.vector_store %arg7[%c0_30, %c0_31, %c0_32], %28 {strides = array<i32>} : memref<1x2x128xf32, #tpu.memory_space<vmem>>, vector<1x2x128xf32>,
    return
  }
  func.func @transform_0(%arg0: i32, %arg1: i32) -> (i32, i32, i32, i32) {
    %c0_i32 = arith.constant 0 : i32
    %c0_i32_0 = arith.constant 0 : i32
    %c0_i32_1 = arith.constant 0 : i32
    return %arg0, %c0_i32, %arg1, %c0_i32_0 : i32, i32, i32, i32
  }
  func.func @transform_1(%arg0: i32, %arg1: i32) -> (i32, i32, i32, i32) {
    %c0_i32 = arith.constant 0 : i32
    %c0_i32_0 = arith.constant 0 : i32
    %c0_i32_1 = arith.constant 0 : i32
    return %arg0, %c0_i32, %arg1, %c0_i32_0 : i32, i32, i32, i32
  }
  func.func @transform_2(%arg0: i32, %arg1: i32) -> (i32, i32, i32, i32) {
    %c0_i32 = arith.constant 0 : i32
    %c0_i32_0 = arith.constant 0 : i32
    %c0_i32_1 = arith.constant 0 : i32
    return %arg0, %c0_i32, %arg1, %c0_i32_0 : i32, i32, i32, i32
  }
  func.func @transform_3(%arg0: i32, %arg1: i32) -> (i32, i32, i32, i32) {
    %c0_i32 = arith.constant 0 : i32
    %c0_i32_0 = arith.constant 0 : i32
    %c0_i32_1 = arith.constant 0 : i32
    return %arg0, %c0_i32, %arg1, %c0_i32_0 : i32, i32, i32, i32
  }
  func.func @transform_4(%arg0: i32, %arg1: i32) -> (i32, i32, i32) {
    %c0_i32 = arith.constant 0 : i32
    %c0_i32_0 = arith.constant 0 : i32
    %c0_i32_1 = arith.constant 0 : i32
    return %arg0, %c0_i32, %c0_i32_0 : i32, i32, i32
  }
  func.func @transform_5(%arg0: i32, %arg1: i32) -> (i32, i32, i32) {
    %c0_i32 = arith.constant 0 : i32
    %c0_i32_0 = arith.constant 0 : i32
    %c0_i32_1 = arith.constant 0 : i32
    return %arg0, %c0_i32, %c0_i32_0 : i32, i32, i32
  }
}

</mosaic_0001>

<llo_original>
// kernel: tpu_custom_call.1
$region0: #{tpu_custom_call.1}
  #allocation0 [shape = 'u32[]', space=smem, size = 0x4, offset = 0x4, fixed_abs, tag = 'smem constant byte address 0x4 - core index']
  #allocation1 [shape = 'u32[144,128]{1,0:T(1,128)}', space=vmem, size = 0x12000, scoped, tag = 'internal scratch']
  %s0 = inlined_call_operand.hbm [shape: f32[2,2,2,128], index: 0, kind: input, shape index: {}]
  %s1 = inlined_call_operand.hbm [shape: f32[2,2,2,128], index: 1, kind: input, shape index: {}]
  %s2 = inlined_call_operand.hbm [shape: f32[2,4,2,128], index: 2, kind: input, shape index: {}]
  %s3 = inlined_call_operand.hbm [shape: f32[2,4,2,128], index: 3, kind: input, shape index: {}]
  %s4 = inlined_call_operand.hbm [shape: f32[2,2,128], index: 4, kind: output, shape index: {0}]
  %s5 = inlined_call_operand.hbm [shape: f32[2,2,128], index: 5, kind: output, shape index: {1}]
  %6 = xla_tuple %s4, %s5
  %s7 = sld [smem:[#allocation0]]
  $region77: #{tpu_custom_call.1} parent=0
    _
  %s9 = ssub.s32 1, %s7
  %s10 = scalar_select 0, %s9, %s7
  $region1: #{tpu_custom_call.1} parent=0
    #allocation2 [shape = 'u8[4096]{0}', space=vmem, size = 0x1000, scoped, tag = 'input window, operand 0']
    #allocation3 [shape = 's32[2]{0}', space=sflag, size = 0x8, scoped, tag = 'scoped memory for tpu_custom_call.1']
    #allocation4 [shape = 's32[2]{0}', space=sflag, size = 0x8, scoped, tag = 'scoped memory for tpu_custom_call.1']
    #allocation5 [shape = 'u8[4096]{0}', space=vmem, size = 0x1000, scoped, tag = 'input window, operand 1']
    #allocation6 [shape = 's32[2]{0}', space=sflag, size = 0x8, scoped, tag = 'scoped memory for tpu_custom_call.1']
    #allocation7 [shape = 'u8[8192]{0}', space=vmem, size = 0x2000, scoped, tag = 'input window, operand 2']
    #allocation8 [shape = 'u8[8192]{0}', space=vmem, size = 0x2000, scoped, tag = 'input window, operand 3']
    #allocation9 [shape = 's32[2]{0}', space=sflag, size = 0x8, scoped, tag = 'scoped memory for tpu_custom_call.1']
    #allocation10 [shape = 'u8[2048]{0}', space=vmem, size = 0x800, scoped, tag = 'output window, operand 0']
    #allocation11 [shape = 'u8[2048]{0}', space=vmem, size = 0x800, scoped, tag = 'output window, operand 1']
    #allocation12 [shape = 's32[2]{0}', space=sflag, size = 0x8, scoped, tag = 'scoped memory for tpu_custom_call.1']
    %11 = vsyncpa [#allocation3], 0
    %s12 = scalar_lea.sflag [#allocation3], 1
    %13 = vsyncpa %s12, 0
    %14 = vsyncpa [#allocation6], 0
    %s15 = scalar_lea.sflag [#allocation6], 1
    %16 = vsyncpa %s15, 0
    %17 = vsyncpa [#allocation9], 0
    %s18 = scalar_lea.sflag [#allocation9], 1
    %19 = vsyncpa %s18, 0
    %20 = vsyncpa [#allocation4], 0
    %s21 = scalar_lea.sflag [#allocation4], 1
    %22 = vsyncpa %s21, 0
    %23 = vsyncpa [#allocation12], 0
    %s24 = scalar_lea.sflag [#allocation12], 1
    %25 = vsyncpa %s24, 0
    loop: start=0, step=1, limit=4
    $region2: #{tpu_custom_call.1} parent=1 // loop_pre_header
      _
    $region3: #{tpu_custom_call.1} parent=1 // loop_header
      %s27 = sphi 0, %s31
      %p28 = scmp.ge.s32.totalorder %s27, 4
      %s34 = sphi 0, %s46
      %s35 = sphi 0, %s42
      %s36 = sphi 0, %s34
      %s37 = sphi 0, %s35
      %s38 = sphi 0, %s36
      %s39 = sphi 0, %s37
      %s51 = sphi 0, %s53
      %s54 = sphi 0, %s51
      %s55 = sphi 0, %s54
      %s71 = sphi 0, %s55
      %s79 = sphi 0, %s81
      %s82 = sphi 0, %s79
      %s83 = sphi 0, %s82
      %s99 = sphi 0, %s83
      %s107 = sphi 0, %s109
      %s110 = sphi 0, %s107
      %s111 = sphi 0, %s110
      %s127 = sphi 0, %s111
      %s135 = sphi 0, %s137
      %s138 = sphi 0, %s135
      %s139 = sphi 0, %s138
      %s155 = sphi 0, %s139
      %s161 = sphi 0, %s163
      %s164 = sphi 0, %s161
      %s165 = sphi 0, %s164
      %s181 = sphi 0, %s165
      %s187 = sphi 0, %s189
      %s190 = sphi 0, %s187
      %s191 = sphi 0, %s190
      %s207 = sphi 0, %s191
    $region4: #{tpu_custom_call.1} parent=1 // loop_header_branch
      %30 = sbr.rel (%p28) target = $region8
    $region5: #{tpu_custom_call.1} parent=1 // loop_body
      %s32 = ssub.s32 %s27, 1
      %s33 = ssub.s32 %s27, 2
      %s40 = sadd.s32 1, %s35
      %p41 = scmp.ge.s32.totalorder %s40, 1
      %s42 = scalar_select %p41, 0, %s40
      %s43 = sadd.s32 1, %s34
      %s44 = scalar_select %p41, %s43, %s34
      %p45 = scmp.ge.s32.totalorder %s44, 2
      %s46 = scalar_select %p45, 0, %s44
      %s47 = ssub.s32 %s34, %s46
      %s48 = ssub.s32 %s35, %s42
      %s49 = sor.u32 %s47, %s48
      %p50 = scmp.eq.s32.totalorder %s49, 0
      %s52 = sadd.s32 %s51, 1
      %s53 = scalar_select %p50, %s51, %s52
      %p56 = pneg %p50
      %p57 = scmp.eq.s32.totalorder %s27, 1
      %p58 = por %p56, %p57
      %p59 = scmp.ne.s32.totalorder %s51, %s54
      %p60 = scmp.eq.s32.totalorder %s27, 0
      %p61 = por %p59, %p60
      %p62 = scmp.ne.s32.totalorder %s51, %s54
      %p63 = scmp.eq.s32.totalorder %s32, 1
      %p64 = por %p62, %p63
      %p65 = scmp.ne.s32.totalorder %s54, %s55
      %p66 = scmp.eq.s32.totalorder %s32, 0
      %p67 = por %p65, %p66
      %p68 = scmp.ne.s32.totalorder %s54, %s55
      %p69 = scmp.eq.s32.totalorder %s33, 1
      %p70 = por %p68, %p69
      %p72 = scmp.ne.s32.totalorder %s55, %s71
      %p73 = scmp.eq.s32.totalorder %s33, 0
      %p74 = por %p72, %p73
      %s75 = ssub.s32 %s34, %s46
      %s76 = ssub.s32 %s35, %s42
      %s77 = sor.u32 %s75, %s76
      %p78 = scmp.eq.s32.totalorder %s77, 0
      %s80 = sadd.s32 %s79, 1
      %s81 = scalar_select %p78, %s79, %s80
      %p84 = pneg %p78
      %p85 = scmp.eq.s32.totalorder %s27, 1
      %p86 = por %p84, %p85
      %p87 = scmp.ne.s32.totalorder %s79, %s82
      %p88 = scmp.eq.s32.totalorder %s27, 0
      %p89 = por %p87, %p88
      %p90 = scmp.ne.s32.totalorder %s79, %s82
      %p91 = scmp.eq.s32.totalorder %s32, 1
      %p92 = por %p90, %p91
      %p93 = scmp.ne.s32.totalorder %s82, %s83
      %p94 = scmp.eq.s32.totalorder %s32, 0
      %p95 = por %p93, %p94
      %p96 = scmp.ne.s32.totalorder %s82, %s83
      %p97 = scmp.eq.s32.totalorder %s33, 1
      %p98 = por %p96, %p97
      %p100 = scmp.ne.s32.totalorder %s83, %s99
      %p101 = scmp.eq.s32.totalorder %s33, 0
      %p102 = por %p100, %p101
      %s103 = ssub.s32 %s34, %s46
      %s104 = ssub.s32 %s35, %s42
      %s105 = sor.u32 %s103, %s104
      %p106 = scmp.eq.s32.totalorder %s105, 0
      %s108 = sadd.s32 %s107, 1
      %s109 = scalar_select %p106, %s107, %s108
      %p112 = pneg %p106
      %p113 = scmp.eq.s32.totalorder %s27, 1
      %p114 = por %p112, %p113
      %p115 = scmp.ne.s32.totalorder %s107, %s110
      %p116 = scmp.eq.s32.totalorder %s27, 0
      %p117 = por %p115, %p116
      %p118 = scmp.ne.s32.totalorder %s107, %s110
      %p119 = scmp.eq.s32.totalorder %s32, 1
      %p120 = por %p118, %p119
      %p121 = scmp.ne.s32.totalorder %s110, %s111
      %p122 = scmp.eq.s32.totalorder %s32, 0
      %p123 = por %p121, %p122
      %p124 = scmp.ne.s32.totalorder %s110, %s111
      %p125 = scmp.eq.s32.totalorder %s33, 1
      %p126 = por %p124, %p125
      %p128 = scmp.ne.s32.totalorder %s111, %s127
      %p129 = scmp.eq.s32.totalorder %s33, 0
      %p130 = por %p128, %p129
      %s131 = ssub.s32 %s34, %s46
      %s132 = ssub.s32 %s35, %s42
      %s133 = sor.u32 %s131, %s132
      %p134 = scmp.eq.s32.totalorder %s133, 0
      %s136 = sadd.s32 %s135, 1
      %s137 = scalar_select %p134, %s135, %s136
      %p140 = pneg %p134
      %p141 = scmp.eq.s32.totalorder %s27, 1
      %p142 = por %p140, %p141
      %p143 = scmp.ne.s32.totalorder %s135, %s138
      %p144 = scmp.eq.s32.totalorder %s27, 0
      %p145 = por %p143, %p144
      %p146 = scmp.ne.s32.totalorder %s135, %s138
      %p147 = scmp.eq.s32.totalorder %s32, 1
      %p148 = por %p146, %p147
      %p149 = scmp.ne.s32.totalorder %s138, %s139
      %p150 = scmp.eq.s32.totalorder %s32, 0
      %p151 = por %p149, %p150
      %p152 = scmp.ne.s32.totalorder %s138, %s139
      %p153 = scmp.eq.s32.totalorder %s33, 1
      %p154 = por %p152, %p153
      %p156 = scmp.ne.s32.totalorder %s139, %s155
      %p157 = scmp.eq.s32.totalorder %s33, 0
      %p158 = por %p156, %p157
      %s159 = ssub.s32 %s34, %s46
      %p160 = scmp.eq.s32.totalorder %s159, 0
      %s162 = sadd.s32 %s161, 1
      %s163 = scalar_select %p160, %s161, %s162
      %p166 = pneg %p160
      %p167 = scmp.eq.s32.totalorder %s27, 1
      %p168 = por %p166, %p167
      %p169 = scmp.ne.s32.totalorder %s161, %s164
      %p170 = scmp.eq.s32.totalorder %s27, 0
      %p171 = por %p169, %p170
      %p172 = scmp.ne.s32.totalorder %s161, %s164
      %p173 = scmp.eq.s32.totalorder %s32, 1
      %p174 = por %p172, %p173
      %p175 = scmp.ne.s32.totalorder %s164, %s165
      %p176 = scmp.eq.s32.totalorder %s32, 0
      %p177 = por %p175, %p176
      %p178 = scmp.ne.s32.totalorder %s164, %s165
      %p179 = scmp.eq.s32.totalorder %s33, 1
      %p180 = por %p178, %p179
      %p182 = scmp.ne.s32.totalorder %s165, %s181
      %p183 = scmp.eq.s32.totalorder %s33, 0
      %p184 = por %p182, %p183
      %s185 = ssub.s32 %s34, %s46
      %p186 = scmp.eq.s32.totalorder %s185, 0
      %s188 = sadd.s32 %s187, 1
      %s189 = scalar_select %p186, %s187, %s188
      %p192 = pneg %p186
      %p193 = scmp.eq.s32.totalorder %s27, 1
      %p194 = por %p192, %p193
      %p195 = scmp.ne.s32.totalorder %s187, %s190
      %p196 = scmp.eq.s32.totalorder %s27, 0
      %p197 = por %p195, %p196
      %p198 = scmp.ne.s32.totalorder %s187, %s190
      %p199 = scmp.eq.s32.totalorder %s32, 1
      %p200 = por %p198, %p199
      %p201 = scmp.ne.s32.totalorder %s190, %s191
      %p202 = scmp.eq.s32.totalorder %s32, 0
      %p203 = por %p201, %p202
      %p204 = scmp.ne.s32.totalorder %s190, %s191
      %p205 = scmp.eq.s32.totalorder %s33, 1
      %p206 = por %p204, %p205
      %p208 = scmp.ne.s32.totalorder %s191, %s207
      %p209 = scmp.eq.s32.totalorder %s33, 0
      %p210 = por %p208, %p209
      %p211 = scmp.le.s32.totalorder 1, %s27
      %p212 = scmp.lt.s32.totalorder %s27, 3
      %p213 = pnand %p211, %p212
      %p214 = pneg %p213
      // Predicated region
      $region9: #{tpu_custom_call.1} parent=5 // pred_check
        _
      $region10: #{tpu_custom_call.1} parent=5 // pred_check_branch
        %216 = sbr.rel (%p213) target = $region12
      $region11: #{tpu_custom_call.1} parent=5 // pred_region
        %s217 = ssub.s32 %s27, 1
      $region12: #{tpu_custom_call.1} parent=5 // pred_fallthru
        _
      %p218 = scmp.lt.s32.totalorder %s27, 2
      // Predicated region
      $region13: #{tpu_custom_call.1} parent=5 // pred_check
        %p219 = pneg %p218
      $region14: #{tpu_custom_call.1} parent=5 // pred_check_branch
        %221 = sbr.rel (%p219) target = $region16
      $region15: #{tpu_custom_call.1} parent=5 // pred_region
        // Predicated region
        $region17: #{tpu_custom_call.1} parent=15 // pred_check
          %p222 = pneg %p61
        $region18: #{tpu_custom_call.1} parent=15 // pred_check_branch
          %224 = sbr.rel (%p222) target = $region20
        $region19: #{tpu_custom_call.1} parent=15 // pred_region
          %s225 = sand.u32 %s51, 1
          %s226 = scalar_lea.sflag [#allocation3], %s225
          %s227 = sand.u32 %s51, 1
          %s228 = smul.addr %s227, 4
          %s229 = scalar_lea.vmem [#allocation2], %s228
          %s231 = ssub.s32 64, 64
          %232 = vsyncadd %s226, %s231
          %s233 = smul.addr %s34, 2
          %s234 = sadd.s32 %s35, %s233
          %s235 = smul.addr %s234, 32
          %s236 = scalar_lea.hbm %s0, %s235
          %s237 = sshll.u32 %s229, 4
          %s238 = int_to_ptr.vmem [resolvable:$true] %s237
          %243 = dma.hbm_to_vmem [thread:$0]  %s236, 64, %s238, %s226, 32, 32, 2
        $region20: #{tpu_custom_call.1} parent=15 // pred_fallthru
          _
        // Predicated region
        $region21: #{tpu_custom_call.1} parent=15 // pred_check
          %p244 = pneg %p89
        $region22: #{tpu_custom_call.1} parent=15 // pred_check_branch
          %246 = sbr.rel (%p244) target = $region24
        $region23: #{tpu_custom_call.1} parent=15 // pred_region
          %s247 = sand.u32 %s27, 1
          %s248 = scalar_lea.sflag [#allocation6], %s247
          %s249 = sand.u32 %s79, 1
          %s250 = smul.addr %s249, 4
          %s251 = scalar_lea.vmem [#allocation5], %s250
          %s253 = ssub.s32 64, 64
          %254 = vsyncadd %s248, %s253
          %s255 = smul.addr %s34, 2
          %s256 = sadd.s32 %s35, %s255
          %s257 = smul.addr %s256, 32
          %s258 = scalar_lea.hbm %s1, %s257
          %s259 = sshll.u32 %s251, 4
          %s260 = int_to_ptr.vmem [resolvable:$true] %s259
          %265 = dma.hbm_to_vmem [thread:$0]  %s258, 64, %s260, %s248, 32, 32, 2
        $region24: #{tpu_custom_call.1} parent=15 // pred_fallthru
          _
        // Predicated region
        $region25: #{tpu_custom_call.1} parent=15 // pred_check
          %p266 = pneg %p117
        $region26: #{tpu_custom_call.1} parent=15 // pred_check_branch
          %268 = sbr.rel (%p266) target = $region28
        $region27: #{tpu_custom_call.1} parent=15 // pred_region
          %s269 = sand.u32 %s27, 1
          %s270 = scalar_lea.sflag [#allocation6], %s269
          %s271 = sand.u32 %s107, 1
          %s272 = smul.addr %s271, 8
          %s273 = scalar_lea.vmem [#allocation7], %s272
          %s275 = ssub.s32 128, 128
          %276 = vsyncadd %s270, %s275
          %s277 = smul.addr %s34, 4
          %s278 = sadd.s32 %s35, %s277
          %s279 = smul.addr %s278, 32
          %s280 = scalar_lea.hbm %s2, %s279
          %s281 = sshll.u32 %s273, 4
          %s282 = int_to_ptr.vmem [resolvable:$true] %s281
          %287 = dma.hbm_to_vmem [thread:$0]  %s280, 128, %s282, %s270, 32, 32, 2
        $region28: #{tpu_custom_call.1} parent=15 // pred_fallthru
          _
        // Predicated region
        $region29: #{tpu_custom_call.1} parent=15 // pred_check
          %p288 = pneg %p145
        $region30: #{tpu_custom_call.1} parent=15 // pred_check_branch
          %290 = sbr.rel (%p288) target = $region32
        $region31: #{tpu_custom_call.1} parent=15 // pred_region
          %s291 = sand.u32 %s135, 1
          %s292 = scalar_lea.sflag [#allocation9], %s291
          %s293 = sand.u32 %s135, 1
          %s294 = smul.addr %s293, 8
          %s295 = scalar_lea.vmem [#allocation8], %s294
          %s297 = ssub.s32 128, 128
          %298 = vsyncadd %s292, %s297
          %s299 = smul.addr %s34, 4
          %s300 = sadd.s32 %s35, %s299
          %s301 = smul.addr %s300, 32
          %s302 = scalar_lea.hbm %s3, %s301
          %s303 = sshll.u32 %s295, 4
          %s304 = int_to_ptr.vmem [resolvable:$true] %s303
          %309 = dma.hbm_to_vmem [thread:$0]  %s302, 128, %s304, %s292, 32, 32, 2
        $region32: #{tpu_custom_call.1} parent=15 // pred_fallthru
          _
      $region16: #{tpu_custom_call.1} parent=5 // pred_fallthru
        _
      %p310 = scmp.le.s32.totalorder 1, %s27
      %p311 = scmp.lt.s32.totalorder %s27, 3
      %p312 = pnand %p310, %p311
      %p313 = pneg %p312
      // Predicated region
      $region33: #{tpu_custom_call.1} parent=5 // pred_check
        _
      $region34: #{tpu_custom_call.1} parent=5 // pred_check_branch
        %315 = sbr.rel (%p312) target = $region36
      $region35: #{tpu_custom_call.1} parent=5 // pred_region
        %s316 = ssub.s32 %s27, 1
        %s317 = sand.u32 %s54, 1
        %s318 = scalar_lea.sflag [#allocation3], %s317
        %s319 = sand.u32 %s54, 1
        %s320 = smul.addr %s319, 4
        %s321 = scalar_lea.vmem [#allocation2], %s320
        // Predicated region
        $region37: #{tpu_custom_call.1} parent=35 // pred_check
          %p322 = pneg %p67
        $region38: #{tpu_custom_call.1} parent=35 // pred_check_branch
          %324 = sbr.rel (%p322) target = $region40
        $region39: #{tpu_custom_call.1} parent=35 // pred_region
          %325 = dma.done %s318, 64
        $region40: #{tpu_custom_call.1} parent=35 // pred_fallthru
          _
        %s326 = sand.u32 %s32, 1
        %s327 = scalar_lea.sflag [#allocation6], %s326
        %s328 = sand.u32 %s82, 1
        %s329 = smul.addr %s328, 4
        %s330 = scalar_lea.vmem [#allocation5], %s329
        // Predicated region
        $region41: #{tpu_custom_call.1} parent=35 // pred_check
          %p331 = pneg %p95
        $region42: #{tpu_custom_call.1} parent=35 // pred_check_branch
          %333 = sbr.rel (%p331) target = $region44
        $region43: #{tpu_custom_call.1} parent=35 // pred_region
          %334 = dma.done %s327, 64
        $region44: #{tpu_custom_call.1} parent=35 // pred_fallthru
          _
        %s335 = sand.u32 %s32, 1
        %s336 = scalar_lea.sflag [#allocation6], %s335
        %s337 = sand.u32 %s110, 1
        %s338 = smul.addr %s337, 8
        %s339 = scalar_lea.vmem [#allocation7], %s338
        // Predicated region
        $region45: #{tpu_custom_call.1} parent=35 // pred_check
          %p340 = pneg %p123
        $region46: #{tpu_custom_call.1} parent=35 // pred_check_branch
          %342 = sbr.rel (%p340) target = $region48
        $region47: #{tpu_custom_call.1} parent=35 // pred_region
          %343 = dma.done %s336, 128
        $region48: #{tpu_custom_call.1} parent=35 // pred_fallthru
          _
        %s344 = sand.u32 %s138, 1
        %s345 = scalar_lea.sflag [#allocation9], %s344
        %s346 = sand.u32 %s138, 1
        %s347 = smul.addr %s346, 8
        %s348 = scalar_lea.vmem [#allocation8], %s347
        // Predicated region
        $region49: #{tpu_custom_call.1} parent=35 // pred_check
          %p349 = pneg %p151
        $region50: #{tpu_custom_call.1} parent=35 // pred_check_branch
          %351 = sbr.rel (%p349) target = $region52
        $region51: #{tpu_custom_call.1} parent=35 // pred_region
          %352 = dma.done %s345, 128
        $region52: #{tpu_custom_call.1} parent=35 // pred_fallthru
          _
        %s353 = sand.u32 %s54, 1
        %s354 = scalar_lea.sflag [#allocation3], %s353
        %s355 = sand.u32 %s54, 1
        %s356 = smul.addr %s355, 4
        %s357 = scalar_lea.vmem [#allocation2], %s356
        %p358 = pneg %p67
        %p359 = pneg %p64
        %s360 = sand.u32 %s32, 1
        %s361 = scalar_lea.sflag [#allocation6], %s360
        %s362 = sand.u32 %s82, 1
        %s363 = smul.addr %s362, 4
        %s364 = scalar_lea.vmem [#allocation5], %s363
        %p365 = pneg %p95
        %p366 = pneg %p92
        %s367 = sand.u32 %s32, 1
        %s368 = scalar_lea.sflag [#allocation6], %s367
        %s369 = sand.u32 %s110, 1
        %s370 = smul.addr %s369, 8
        %s371 = scalar_lea.vmem [#allocation7], %s370
        %p372 = pneg %p123
        %p373 = pneg %p120
        %s374 = sand.u32 %s138, 1
        %s375 = scalar_lea.sflag [#allocation9], %s374
        %s376 = sand.u32 %s138, 1
        %s377 = smul.addr %s376, 8
        %s378 = scalar_lea.vmem [#allocation8], %s377
        %p379 = pneg %p151
        %p380 = pneg %p148
        %p381 = pneg %p177
        %p382 = pneg %p174
        %s383 = sand.u32 %s164, 1
        %s384 = scalar_lea.sflag [#allocation4], %s383
        %s385 = sand.u32 %s164, 1
        %s386 = smul.addr %s385, 2
        %s387 = scalar_lea.vmem [#allocation10], %s386
        %p388 = pneg %p203
        %p389 = pneg %p200
        %s390 = sand.u32 %s190, 1
        %s391 = scalar_lea.sflag [#allocation12], %s390
        %s392 = sand.u32 %s190, 1
        %s393 = smul.addr %s392, 2
        %s394 = scalar_lea.vmem [#allocation11], %s393
        %p395 = scmp.eq.s32.totalorder %s37, 0
        // Predicated region
        $region53: #{tpu_custom_call.1} parent=35 // pred_check
          %p396 = pneg %p395
        $region54: #{tpu_custom_call.1} parent=35 // pred_check_branch
          %398 = sbr.rel (%p396) target = $region56
        $region55: #{tpu_custom_call.1} parent=35 // pred_region
          %399 = vst [vmem:[%s387] sm:$0x3] 0.0
          %400 = vst [vmem:[%s394] sm:$0x3] 0.0
        $region56: #{tpu_custom_call.1} parent=35 // pred_fallthru
          _
        %v401 = vld [vmem:[%s330] sm:$0x3]
        %v402 = vld [vmem:[%s330 + $0x2] sm:$0x3]
        %v403 = vld [vmem:[%s321] sm:$0x3]
        %v404 = vld [vmem:[%s321 + $0x2] sm:$0x3]
        %vm405 = vcmp.gt.f32.partialorder %v401, 0.5
        %vm406 = vcmp.gt.f32.partialorder %v402, 0.5
        %v407 = vsub.f32 1.0, %v403
        %v408 = vsub.f32 1.0, %v404
        %v409 = vsel %vm405, %v403, %v407
        %v410 = vsel %vm406, %v404, %v408
        %v411 = vlog2.pop %v409
        %v412 = vmul.f32 %v411, 0.6931472
        %v413 = vlog2.pop %v410
        %v414 = vmul.f32 %v413, 0.6931472
        %v415 = vmax.f32 %v412, -100.0
        %v416 = vmax.f32 %v414, -100.0
        %v417 = vsub.f32 0.0, %v415
        %v418 = vsub.f32 0.0, %v416
        %v419 = vld [vmem:[%s387] sm:$0x3]
        %vm420 = vcmask 1041408
        %v421 = vsel %vm420, %v417, 0.0
        %v422 = vsel %vm420, %v418, 0.0
        %v423 = vadd.f32 %v421, %v422
        %v424 = vadd.f32 %v419, %v423
        %425 = vst [vmem:[%s387] sm:$0x3] %v424
        %v426 = vld [vmem:[%s339] sm:$0x3]
        %v427 = vld [vmem:[%s339 + $0x2] sm:$0x3]
        %v428 = vld [vmem:[%s339 + $0x4] sm:$0x3]
        %v429 = vld [vmem:[%s339 + $0x6] sm:$0x3]
        %v430 = vld [vmem:[%s348] sm:$0x3]
        %v431 = vld [vmem:[%s348 + $0x2] sm:$0x3]
        %v432 = vld [vmem:[%s348 + $0x4] sm:$0x3]
        %v433 = vld [vmem:[%s348 + $0x6] sm:$0x3]
        %v434 = vsub.f32 %v426, %v430
        %v435 = vsub.f32 %v427, %v431
        %v436 = vsub.f32 %v428, %v432
        %v437 = vsub.f32 %v429, %v433
        %v438 = vand.u32 2147483647, %v434
        %v439 = vand.u32 2147483647, %v435
        %v440 = vand.u32 2147483647, %v436
        %v441 = vand.u32 2147483647, %v437
        %v442 = vsel %vm420, %v438, 0.0
        %v443 = vsel %vm420, %v439, 0.0
        %v444 = vadd.f32 %v442, %v443
        %v445 = vsel %vm420, %v440, 0.0
        %v446 = vadd.f32 %v444, %v445
        %v447 = vsel %vm420, %v441, 0.0
        %v448 = vadd.f32 %v446, %v447
        %v449 = vld [vmem:[%s394] sm:$0x3]
        %v450 = vmul.f32 %v448, %v401
        %v451 = vadd.f32 %v449, %v450
        %452 = vst [vmem:[%s394] sm:$0x3] %v451
        %s453 = sand.u32 %s164, 1
        %s454 = scalar_lea.sflag [#allocation4], %s453
        %s455 = sand.u32 %s164, 1
        %s456 = smul.addr %s455, 2
        %s457 = scalar_lea.vmem [#allocation10], %s456
        %s458 = sand.u32 %s190, 1
        %s459 = scalar_lea.sflag [#allocation12], %s458
        %s460 = sand.u32 %s190, 1
        %s461 = smul.addr %s460, 2
        %s462 = scalar_lea.vmem [#allocation11], %s461
        // Predicated region
        $region57: #{tpu_custom_call.1} parent=35 // pred_check
          %p463 = pneg %p174
        $region58: #{tpu_custom_call.1} parent=35 // pred_check_branch
          %465 = sbr.rel (%p463) target = $region60
        $region59: #{tpu_custom_call.1} parent=35 // pred_region
          %s467 = ssub.s32 32, 32
          %468 = vsyncadd %s454, %s467
          %s469 = smul.addr %s36, 32
          %s470 = scalar_lea.hbm %s4, %s469
          %s472 = sshll.u32 %s457, 4
          %s473 = int_to_ptr.vmem [resolvable:$true] %s472
          %475 = dma.vmem_to_hbm [thread:$0]  %s473, 32, %s470, %s454
        $region60: #{tpu_custom_call.1} parent=35 // pred_fallthru
          _
        // Predicated region
        $region61: #{tpu_custom_call.1} parent=35 // pred_check
          %p476 = pneg %p200
        $region62: #{tpu_custom_call.1} parent=35 // pred_check_branch
          %478 = sbr.rel (%p476) target = $region64
        $region63: #{tpu_custom_call.1} parent=35 // pred_region
          %s480 = ssub.s32 32, 32
          %481 = vsyncadd %s459, %s480
          %s482 = smul.addr %s36, 32
          %s483 = scalar_lea.hbm %s5, %s482
          %s485 = sshll.u32 %s462, 4
          %s486 = int_to_ptr.vmem [resolvable:$true] %s485
          %488 = dma.vmem_to_hbm [thread:$0]  %s486, 32, %s483, %s459
        $region64: #{tpu_custom_call.1} parent=35 // pred_fallthru
          _
      $region36: #{tpu_custom_call.1} parent=5 // pred_fallthru
        _
      %p489 = scmp.le.s32.totalorder 2, %s27
      // Predicated region
      $region65: #{tpu_custom_call.1} parent=5 // pred_check
        %p490 = pneg %p489
      $region66: #{tpu_custom_call.1} parent=5 // pred_check_branch
        %492 = sbr.rel (%p490) target = $region68
      $region67: #{tpu_custom_call.1} parent=5 // pred_region
        %s493 = ssub.s32 %s27, 2
        // Predicated region
        $region69: #{tpu_custom_call.1} parent=67 // pred_check
          %p494 = pneg %p180
        $region70: #{tpu_custom_call.1} parent=67 // pred_check_branch
          %496 = sbr.rel (%p494) target = $region72
        $region71: #{tpu_custom_call.1} parent=67 // pred_region
          %s497 = sand.u32 %s165, 1
          %s498 = scalar_lea.sflag [#allocation4], %s497
          %s499 = sand.u32 %s165, 1
          %s500 = smul.addr %s499, 2
          %s501 = scalar_lea.vmem [#allocation10], %s500
          %502 = dma.done %s498, 32
        $region72: #{tpu_custom_call.1} parent=67 // pred_fallthru
          _
        // Predicated region
        $region73: #{tpu_custom_call.1} parent=67 // pred_check
          %p503 = pneg %p206
        $region74: #{tpu_custom_call.1} parent=67 // pred_check_branch
          %505 = sbr.rel (%p503) target = $region76
        $region75: #{tpu_custom_call.1} parent=67 // pred_region
          %s506 = sand.u32 %s191, 1
          %s507 = scalar_lea.sflag [#allocation12], %s506
          %s508 = sand.u32 %s191, 1
          %s509 = smul.addr %s508, 2
          %s510 = scalar_lea.vmem [#allocation11], %s509
          %511 = dma.done %s507, 32
        $region76: #{tpu_custom_call.1} parent=67 // pred_fallthru
          _
      $region68: #{tpu_custom_call.1} parent=5 // pred_fallthru
        _
    $region6: #{tpu_custom_call.1} parent=1 // loop_footer
      %s31 = sadd.s32 1, %s27
    $region7: #{tpu_custom_call.1} parent=1 // loop_footer_branch
      %26 = sbr.rel target = $region3
    $region8: #{tpu_custom_call.1} parent=1 // loop_exit
      _
    %512 = vsyncpa [#allocation3], 1
    %s513 = scalar_lea.sflag [#allocation3], 1
    %514 = vsyncpa %s513, 1
    %515 = vsyncpa [#allocation6], 1
    %s516 = scalar_lea.sflag [#allocation6], 1
    %517 = vsyncpa %s516, 1
    %518 = vsyncpa [#allocation9], 1
    %s519 = scalar_lea.sflag [#allocation9], 1
    %520 = vsyncpa %s519, 1
    %521 = vsyncpa [#allocation4], 1
    %s522 = scalar_lea.sflag [#allocation4], 1
    %523 = vsyncpa %s522, 1
    %524 = vsyncpa [#allocation12], 1
    %s525 = scalar_lea.sflag [#allocation12], 1
    %526 = vsyncpa %s525, 1

</llo_original>
